<compile_context>
chip_gen: v5e
topology: v5e:2x2
jax: 0.10.0
libtpu: 0.0.40
codegen_flags: <defaults>
</compile_context>

<pallas_src>
import functools

import jax
import jax.numpy as jnp
from jax.experimental import pallas as pl
from jax.experimental.pallas import tpu as pltpu


def _round_up(x, m):
    return ((x + m - 1) // m) * m


def _vmem_capacity_bytes(default=64 * 1024 * 1024):
    """Physical VMEM of the attached TPU; conservative (v7x) fallback if unknown."""
    try:
        return int(pltpu.get_tpu_info().vmem_capacity_bytes)
    except Exception:
        return default


# --------------------------------------------------------------------------- #
# Kernel
# --------------------------------------------------------------------------- #
def _unit_gcn_kernel(x_ref, a_ref, w_ref, shift_ref, o_ref, xa_ref, *, K, C_p):
    """One (batch, T-tile) step of the fused unit_gcn forward.

    x_ref     : (1, C_p, L)          lane-dense input tile (L = TT*V_p)
    a_ref     : (K, L, L)            block-diagonal, pre-normalized adjacencies
    w_ref     : (OC, (K+1)*C_p)      BN-scaled conv weights ++ residual projection
    shift_ref : (OC, 1) f32          folded conv bias + BN shift (+ down branch)
    o_ref     : (1, OC, L)           lane-dense output tile
    xa_ref    : ((K+1)*C_p, L)       VMEM scratch holding [x@A_0; ...; x@A_{K-1}; x]
    """
    x = x_ref[0]                                          # (C_p, L)

    # Graph matmuls on the MXU; results are already lane-dense -> no relayout.
    for k in range(K):                                    # static unroll
        xa = jnp.dot(x, a_ref[k], preferred_element_type=jnp.float32)
        xa_ref[k * C_p:(k + 1) * C_p, :] = xa.astype(xa_ref.dtype)
    # Residual / down-projection input occupies the last C_p rows.
    xa_ref[K * C_p:(K + 1) * C_p, :] = x.astype(xa_ref.dtype)

    # Fused 1x1 convs over all subsets + BN scale + residual: one MXU matmul.
    y = jnp.dot(w_ref[...], xa_ref[...], preferred_element_type=jnp.float32)
    y = y + shift_ref[...]                                # folded bias / BN / down shift
    o_ref[0] = jnp.maximum(y, 0.0).astype(o_ref.dtype)


# --------------------------------------------------------------------------- #
# Tiling heuristic
# --------------------------------------------------------------------------- #
def _pick_block_t(T, V_p, N, C_p, OC, K, itemsize, budget_bytes):
    """Pick a T-tile TT: lane-dense (TT*V_p % 128 == 0), VMEM-fitting, and with
    enough grid steps for two-TensorCore balance when possible."""
    def footprint(tt):
        L = tt * V_p
        return (2 * C_p * L * itemsize            # x block (double-buffered)
                + 2 * OC * L * itemsize           # out block (double-buffered)
                + K * L * L * itemsize            # block-diagonal adjacencies
                + OC * (K + 1) * C_p * itemsize   # fused weights
                + (K + 1) * C_p * L * itemsize    # XA scratch
                + 2 * OC * L * 4)                 # f32 epilogue temporaries

    divs = sorted((d for d in range(1, T + 1) if T % d == 0), reverse=True)
    aligned = [d for d in divs if (d * V_p) % 128 == 0]
    fitting = [d for d in aligned if footprint(d) <= budget_bytes]
    # Lane width <= 512 keeps the quadratic block-diag adjacency small while the
    # MXU contraction/output dims are already well filled.
    pref = [d for d in fitting if d * V_p <= 512]
    for d in pref:                       # largest tile that still gives >= 4 steps
        if N * (T // d) >= 4:
            return d
    if pref:
        return pref[-1]                  # smallest "nice" tile (max grid steps)
    if fitting:
        return fitting[-1]               # smallest aligned tile that fits
    if aligned:
        return aligned[-1]
    return T                             # no aligned divisor: full-extent block


# --------------------------------------------------------------------------- #
# Wrapper
# --------------------------------------------------------------------------- #
def unit_gcn_forward(x, A, conv_w, conv_b,
                     bn_gamma, bn_beta, bn_mean, bn_var,
                     down_w=None, down_b=None,
                     down_bn_gamma=None, down_bn_beta=None,
                     down_bn_mean=None, down_bn_var=None,
                     *, eps=1e-5, adaptive=True, block_t=None, compute_dtype=None):
    """unit_gcn forward.  x: (N, C, T, V) -> (N, OC, T, V)."""
    N, C, T, V = x.shape
    K = A.shape[0]
    OC = conv_w.shape[1]                                   # conv_w: (K, OC, C)
    cdt = jnp.dtype(compute_dtype) if compute_dtype is not None else jnp.dtype(x.dtype)

    # ---- hoisted adaptive L2 norm of A (grid-invariant) ----
    A = A.astype(jnp.float32)
    if adaptive:
        A = A / (jnp.sqrt(jnp.sum(A * A, axis=1, keepdims=True)) + 1e-4)

    # ---- fold conv bias + BatchNorm (inference) + residual into weight/shift ----
    inv = bn_gamma / jnp.sqrt(bn_var + eps)                # (OC,)
    shift = bn_beta - bn_mean * inv + inv * jnp.sum(conv_b, axis=0)
    w_per_k = jnp.transpose(conv_w, (1, 0, 2)) * inv[:, None, None]   # (OC, K, C)
    if down_w is not None:                                 # 1x1-conv + BN down branch
        dinv = down_bn_gamma / jnp.sqrt(down_bn_var + eps)
        w_res = dinv[:, None] * down_w                     # (OC, C)
        shift = shift + (down_bn_beta - down_bn_mean * dinv + dinv * down_b)
    else:                                                  # identity residual
        if C != OC:
            raise ValueError("identity residual requires in_channels == out_channels")
        w_res = jnp.eye(C, dtype=jnp.float32)

    # ---- channel / vertex padding for aligned, lane-dense layouts ----
    C_p = _round_up(C, 8)
    V_p = _round_up(V, 8)

    def pad_cols(w):                                       # (OC, C) -> (OC, C_p)
        return jnp.pad(w, ((0, 0), (0, C_p - C)))
    w_aug = jnp.concatenate([pad_cols(w_per_k[:, k, :]) for k in range(K)]
                            + [pad_cols(w_res)], axis=1).astype(cdt)   # (OC, (K+1)*C_p)
    shift = shift.reshape(OC, 1).astype(jnp.float32)

    # ---- VMEM budget (generation-aware) and T-tiling ----
    cap = _vmem_capacity_bytes()
    vmem_limit = int(min(max(cap - (16 << 20), cap // 2), 100 << 20))
    itemsize = cdt.itemsize
    TT = block_t if block_t is not None else _pick_block_t(
        T, V_p, N, C_p, OC, K, itemsize, int(vmem_limit * 0.9))
    if T % TT != 0 or (TT != T and (TT * V_p) % 128 != 0):
        TT = T
    L = TT * V_p
    n_t = T // TT

    # ---- block-diagonal adjacencies: A_blk[k] = I_TT  (kron)  A_pad[k] ----
    A_pad = jnp.pad(A, ((0, 0), (0, V_p - V), (0, V_p - V)))           # (K, V_p, V_p)
    eye_tt = jnp.eye(TT, dtype=jnp.float32)
    A_blk = jnp.stack([jnp.kron(eye_tt, A_pad[k]) for k in range(K)]).astype(cdt)

    # ---- lane-dense, padded input ----
    x_p = jnp.pad(x, ((0, 0), (0, C_p - C), (0, 0), (0, V_p - V)))
    x_flat = x_p.reshape(N, C_p, T * V_p).astype(cdt)

    kernel = functools.partial(_unit_gcn_kernel, K=K, C_p=C_p)

    def _call(use_buffered):
        inv_kw = {"pipeline_mode": pl.Buffered(1)} if use_buffered else {}
        in_specs = [
            pl.BlockSpec((1, C_p, L), lambda n, t: (n, 0, t)),
            pl.BlockSpec((K, L, L), lambda n, t: (0, 0, 0), **inv_kw),
            pl.BlockSpec((OC, (K + 1) * C_p), lambda n, t: (0, 0), **inv_kw),
            pl.BlockSpec((OC, 1), lambda n, t: (0, 0), **inv_kw),
        ]
        return pl.pallas_call(
            kernel,
            out_shape=jax.ShapeDtypeStruct((N, OC, T * V_p), x.dtype),
            grid_spec=pltpu.PrefetchScalarGridSpec(
                num_scalar_prefetch=0,
                grid=(N, n_t),
                in_specs=in_specs,
                out_specs=pl.BlockSpec((1, OC, L), lambda n, t: (n, 0, t)),
                scratch_shapes=[pltpu.VMEM(((K + 1) * C_p, L), cdt)],
            ),
            compiler_params=pltpu.CompilerParams(
                dimension_semantics=("parallel", "parallel"),
                vmem_limit_bytes=vmem_limit,
            ),
        )(x_flat, A_blk, w_aug, shift)

    try:
        out = _call(True)            # single-buffer the grid-invariant operands
    except Exception:
        out = _call(False)           # fall back to default double-buffering

    out = out.reshape(N, OC, T, V_p)
    return out[:, :, :, :V] if V_p != V else out


# --------------------------------------------------------------------------- #
# Pure-JAX reference (mirrors the PyTorch eval-mode forward)
# --------------------------------------------------------------------------- #
def unit_gcn_reference(x, A, conv_w, conv_b, bn_g, bn_b, bn_m, bn_v,
                       down_w=None, down_b=None, dg=None, dbt=None, dm=None, dv=None,
                       eps=1e-5, adaptive=True):
    N, C, T, V = x.shape
    K = A.shape[0]
    hi = jax.lax.Precision.HIGHEST
    A = A.astype(jnp.float32)
    if adaptive:
        A = A / (jnp.sqrt(jnp.sum(A * A, axis=1, keepdims=True)) + 1e-4)
    x2 = x.reshape(N, C * T, V)
    y = None
    for k in range(K):
        xa = jnp.matmul(x2, A[k], precision=hi).reshape(N, C, T, V)
        z = jnp.einsum('oc,nctv->notv', conv_w[k], xa, precision=hi)
        z = z + conv_b[k][None, :, None, None]
        y = z if y is None else y + z
    inv = bn_g / jnp.sqrt(bn_v + eps)
    y = inv[None, :, None, None] * (y - bn_m[None, :, None, None]) + bn_b[None, :, None, None]
    if down_w is None:
        r = x
    else:
        r = jnp.einsum('oc,nctv->notv', down_w, x, precision=hi)
        r = r + down_b[None, :, None, None]
        dinv = dg / jnp.sqrt(dv + eps)
        r = dinv[None, :, None, None] * (r - dm[None, :, None, None]) + dbt[None, :, None, None]
    return jnp.maximum(y + r, 0.0)


# --------------------------------------------------------------------------- #
# Demo / correctness check
# --------------------------------------------------------------------------- #
if __name__ == "__main__":
    key = jax.random.PRNGKey(0)
    keys = jax.random.split(key, 16)
    N, C, T, V, K = 2, 4, 16, 16, 3

    x = jax.random.normal(keys[0], (N, C, T, V), dtype=jnp.float32)
    A = jax.random.normal(keys[1], (K, V, V), dtype=jnp.float32)

    def check(got, ref, name, atol, rtol):
        err = float(jnp.max(jnp.abs(got - ref)))
        assert jnp.allclose(got, ref, atol=atol, rtol=rtol), \
            f"{name} mismatch, max abs err {err}"

    # ---- case 1: in_channels == out_channels (identity residual), f32 ----
    OC = C
    conv_w = 0.3 * jax.random.normal(keys[2], (K, OC, C), dtype=jnp.float32)
    conv_b = 0.1 * jax.random.normal(keys[3], (K, OC), dtype=jnp.float32)
    bn_g = 1.0 + 0.1 * jax.random.normal(keys[4], (OC,), dtype=jnp.float32)
    bn_b = 0.1 * jax.random.normal(keys[5], (OC,), dtype=jnp.float32)
    bn_m = 0.1 * jax.random.normal(keys[6], (OC,), dtype=jnp.float32)
    bn_v = jax.random.uniform(keys[7], (OC,), minval=0.5, maxval=1.5)

    y1 = jax.block_until_ready(
        unit_gcn_forward(x, A, conv_w, conv_b, bn_g, bn_b, bn_m, bn_v))
    ref1 = unit_gcn_reference(x, A, conv_w, conv_b, bn_g, bn_b, bn_m, bn_v)
    assert y1.shape == (N, OC, T, V)
    # MXU f32 matmuls may be emulated at slightly reduced precision -> 2e-2 tolerance.
    check(y1, ref1, "identity-residual", atol=2e-2, rtol=2e-2)

    # ---- case 2: in_channels != out_channels (1x1-conv + BN down branch), f32 ----
    OC2 = 8
    conv_w2 = 0.3 * jax.random.normal(keys[8], (K, OC2, C), dtype=jnp.float32)
    conv_b2 = 0.1 * jax.random.normal(keys[9], (K, OC2), dtype=jnp.float32)
    bn_g2 = 1.0 + 0.1 * jax.random.normal(keys[10], (OC2,), dtype=jnp.float32)
    bn_b2 = 0.1 * jax.random.normal(keys[11], (OC2,), dtype=jnp.float32)
    bn_m2 = 0.1 * jax.random.normal(keys[12], (OC2,), dtype=jnp.float32)
    bn_v2 = jax.random.uniform(keys[13], (OC2,), minval=0.5, maxval=1.5)
    down_w = 0.3 * jax.random.normal(keys[14], (OC2, C), dtype=jnp.float32)
    down_b = 0.1 * jax.random.normal(keys[15], (OC2,), dtype=jnp.float32)
    dbn_g = jnp.ones((OC2,), jnp.float32)
    dbn_b = jnp.zeros((OC2,), jnp.float32)
    dbn_m = jnp.zeros((OC2,), jnp.float32)
    dbn_v = jnp.ones((OC2,), jnp.float32)

    y2 = jax.block_until_ready(
        unit_gcn_forward(x, A, conv_w2, conv_b2, bn_g2, bn_b2, bn_m2, bn_v2,
                         down_w=down_w, down_b=down_b,
                         down_bn_gamma=dbn_g, down_bn_beta=dbn_b,
                         down_bn_mean=dbn_m, down_bn_var=dbn_v))
    ref2 = unit_gcn_reference(x, A, conv_w2, conv_b2, bn_g2, bn_b2, bn_m2, bn_v2,
                              down_w, down_b, dbn_g, dbn_b, dbn_m, dbn_v)
    assert y2.shape == (N, OC2, T, V)
    check(y2, ref2, "down-branch", atol=2e-2, rtol=2e-2)

    # ---- case 3: same as case 2 but with bf16 MXU operands (f32 accumulation) ----
    y3 = jax.block_until_ready(
        unit_gcn_forward(x, A, conv_w2, conv_b2, bn_g2, bn_b2, bn_m2, bn_v2,
                         down_w=down_w, down_b=down_b,
                         down_bn_gamma=dbn_g, down_bn_beta=dbn_b,
                         down_bn_mean=dbn_m, down_bn_var=dbn_v,
                         compute_dtype=jnp.bfloat16))
    check(y3, ref2, "bf16-compute", atol=1e-1, rtol=1e-1)

    print("KERNEL_OK")
</pallas_src>

<mosaic_0001>
module attributes {stable_mosaic.version = 11 : i64} {
  func.func @_unit_gcn_kernel(%arg0: i32, %arg1: i32, %arg2: memref<1x8x128xf32, #tpu.memory_space<vmem>>, %arg3: memref<3x128x128xf32, #tpu.memory_space<vmem>>, %arg4: memref<4x32xf32, #tpu.memory_space<vmem>>, %arg5: memref<4x1xf32, #tpu.memory_space<vmem>>, %arg6: memref<1x4x128xf32, #tpu.memory_space<vmem>>, %arg7: memref<32x128xf32, #tpu.memory_space<vmem>>) attributes {dimension_semantics = [#tpu.dimension_semantics<parallel>, #tpu.dimension_semantics<parallel>], iteration_bounds = array<i64: 2, 2>, scalar_prefetch = 0 : i64, scratch_operands = 1 : i64, tpu.core_type = #tpu.core_type<tc>, window_params = [{transform_indices = @transform_0, window_bounds = array<i64: 1, 8, 128>}, {pipeline_mode = #tpu.pipeline_mode<synchronous>, transform_indices = @transform_1, window_bounds = array<i64: 3, 128, 128>}, {pipeline_mode = #tpu.pipeline_mode<synchronous>, transform_indices = @transform_2, window_bounds = array<i64: 4, 32>}, {pipeline_mode = #tpu.pipeline_mode<synchronous>, transform_indices = @transform_3, window_bounds = array<i64: 4, 1>}, {transform_indices = @transform_4, window_bounds = array<i64: 1, 4, 128>}]} {
    %c0 = arith.constant 0 : index
    %c0_0 = arith.constant 0 : index
    %c0_1 = arith.constant 0 : index
    %0 = vector.load %arg2[%c0, %c0_0, %c0_1] : memref<1x8x128xf32, #tpu.memory_space<vmem>>, vector<1x8x128xf32>
    %1 = vector.shape_cast %0 : vector<1x8x128xf32> to vector<8x128xf32>
    %c0_2 = arith.constant 0 : index
    %c0_3 = arith.constant 0 : index
    %c0_4 = arith.constant 0 : index
    %2 = vector.load %arg3[%c0_2, %c0_3, %c0_4] : memref<3x128x128xf32, #tpu.memory_space<vmem>>, vector<1x128x128xf32>
    %3 = vector.shape_cast %2 : vector<1x128x128xf32> to vector<128x128xf32>
    %cst = arith.constant dense<0.000000e+00> : vector<8x128xf32>
    %4 = tpu.matmul %1, %3, %cst {dimension_numbers = #tpu.dot_dimension_numbers<[1], [0], [0], [1], [0, 0, 1, 1], [], []>} : vector<8x128xf32>, vector<128x128xf32>, vector<8x128xf32> -> vector<8x128xf32>
    %c0_5 = arith.constant 0 : index
    %c0_6 = arith.constant 0 : index
    %5 = vector.load %arg7[%c0_5, %c0_6] : memref<32x128xf32, #tpu.memory_space<vmem>>, vector<8x128xf32>
    tpu.vector_store %arg7[%c0_5, %c0_6], %4 {strides = array<i32>} : memref<32x128xf32, #tpu.memory_space<vmem>>, vector<8x128xf32>,
    %c1 = arith.constant 1 : index
    %c0_7 = arith.constant 0 : index
    %c0_8 = arith.constant 0 : index
    %6 = vector.load %arg3[%c1, %c0_7, %c0_8] : memref<3x128x128xf32, #tpu.memory_space<vmem>>, vector<1x128x128xf32>
    %7 = vector.shape_cast %6 : vector<1x128x128xf32> to vector<128x128xf32>
    %cst_9 = arith.constant dense<0.000000e+00> : vector<8x128xf32>
    %8 = tpu.matmul %1, %7, %cst_9 {dimension_numbers = #tpu.dot_dimension_numbers<[1], [0], [0], [1], [0, 0, 1, 1], [], []>} : vector<8x128xf32>, vector<128x128xf32>, vector<8x128xf32> -> vector<8x128xf32>
    %c8 = arith.constant 8 : index
    %c0_10 = arith.constant 0 : index
    %9 = vector.load %arg7[%c8, %c0_10] : memref<32x128xf32, #tpu.memory_space<vmem>>, vector<8x128xf32>
    tpu.vector_store %arg7[%c8, %c0_10], %8 {strides = array<i32>} : memref<32x128xf32, #tpu.memory_space<vmem>>, vector<8x128xf32>,
    %c2 = arith.constant 2 : index
    %c0_11 = arith.constant 0 : index
    %c0_12 = arith.constant 0 : index
    %10 = vector.load %arg3[%c2, %c0_11, %c0_12] : memref<3x128x128xf32, #tpu.memory_space<vmem>>, vector<1x128x128xf32>
    %11 = vector.shape_cast %10 : vector<1x128x128xf32> to vector<128x128xf32>
    %cst_13 = arith.constant dense<0.000000e+00> : vector<8x128xf32>
    %12 = tpu.matmul %1, %11, %cst_13 {dimension_numbers = #tpu.dot_dimension_numbers<[1], [0], [0], [1], [0, 0, 1, 1], [], []>} : vector<8x128xf32>, vector<128x128xf32>, vector<8x128xf32> -> vector<8x128xf32>
    %c16 = arith.constant 16 : index
    %c0_14 = arith.constant 0 : index
    %13 = vector.load %arg7[%c16, %c0_14] : memref<32x128xf32, #tpu.memory_space<vmem>>, vector<8x128xf32>
    tpu.vector_store %arg7[%c16, %c0_14], %12 {strides = array<i32>} : memref<32x128xf32, #tpu.memory_space<vmem>>, vector<8x128xf32>,
    %c24 = arith.constant 24 : index
    %c0_15 = arith.constant 0 : index
    %14 = vector.load %arg7[%c24, %c0_15] : memref<32x128xf32, #tpu.memory_space<vmem>>, vector<8x128xf32>
    tpu.vector_store %arg7[%c24, %c0_15], %1 {strides = array<i32>} : memref<32x128xf32, #tpu.memory_space<vmem>>, vector<8x128xf32>,
    %c0_16 = arith.constant 0 : index
    %c0_17 = arith.constant 0 : index
    %15 = vector.load %arg4[%c0_16, %c0_17] : memref<4x32xf32, #tpu.memory_space<vmem>>, vector<4x32xf32>
    %c0_18 = arith.constant 0 : index
    %c0_19 = arith.constant 0 : index
    %16 = vector.load %arg7[%c0_18, %c0_19] : memref<32x128xf32, #tpu.memory_space<vmem>>, vector<32x128xf32>
    %cst_20 = arith.constant dense<0.000000e+00> : vector<4x128xf32>
    %17 = tpu.matmul %15, %16, %cst_20 {dimension_numbers = #tpu.dot_dimension_numbers<[1], [0], [0], [1], [0, 0, 1, 1], [], []>} : vector<4x32xf32>, vector<32x128xf32>, vector<4x128xf32> -> vector<4x128xf32>
    %c0_21 = arith.constant 0 : index
    %c0_22 = arith.constant 0 : index
    %18 = vector.load %arg5[%c0_21, %c0_22] : memref<4x1xf32, #tpu.memory_space<vmem>>, vector<4x1xf32>
    %19 = vector.broadcast %18 : vector<4x1xf32> to vector<4x128xf32>
    %20 = arith.addf %17, %19 : vector<4x128xf32>
    %cst_23 = arith.constant 0.000000e+00 : f32
    %21 = vector.broadcast %cst_23 : f32 to vector<4x128xf32>
    %22 = arith.maximumf %20, %21 : vector<4x128xf32>
    %c0_24 = arith.constant 0 : index
    %c0_25 = arith.constant 0 : index
    %c0_26 = arith.constant 0 : index
    %23 = vector.load %arg6[%c0_24, %c0_25, %c0_26] : memref<1x4x128xf32, #tpu.memory_space<vmem>>, vector<1x4x128xf32>
    %24 = vector.shape_cast %23 : vector<1x4x128xf32> to vector<4x128xf32>
    %25 = vector.shape_cast %22 : vector<4x128xf32> to vector<1x4x128xf32>
    tpu.vector_store %arg6[%c0_24, %c0_25, %c0_26], %25 {strides = array<i32>} : memref<1x4x128xf32, #tpu.memory_space<vmem>>, vector<1x4x128xf32>,
    return
  }
  func.func @transform_0(%arg0: i32, %arg1: i32) -> (i32, i32, i32) {
    %c0_i32 = arith.constant 0 : i32
    %c0_i32_0 = arith.constant 0 : i32
    return %arg0, %c0_i32, %arg1 : i32, i32, i32
  }
  func.func @transform_1(%arg0: i32, %arg1: i32) -> (i32, i32, i32) {
    %c0_i32 = arith.constant 0 : i32
    %c0_i32_0 = arith.constant 0 : i32
    %c0_i32_1 = arith.constant 0 : i32
    %c0_i32_2 = arith.constant 0 : i32
    return %c0_i32, %c0_i32_0, %c0_i32_1 : i32, i32, i32
  }
  func.func @transform_2(%arg0: i32, %arg1: i32) -> (i32, i32) {
    %c0_i32 = arith.constant 0 : i32
    %c0_i32_0 = arith.constant 0 : i32
    %c0_i32_1 = arith.constant 0 : i32
    return %c0_i32, %c0_i32_0 : i32, i32
  }
  func.func @transform_3(%arg0: i32, %arg1: i32) -> (i32, i32) {
    %c0_i32 = arith.constant 0 : i32
    %c0_i32_0 = arith.constant 0 : i32
    %c0_i32_1 = arith.constant 0 : i32
    return %c0_i32, %c0_i32_0 : i32, i32
  }
  func.func @transform_4(%arg0: i32, %arg1: i32) -> (i32, i32, i32) {
    %c0_i32 = arith.constant 0 : i32
    %c0_i32_0 = arith.constant 0 : i32
    return %arg0, %c0_i32, %arg1 : i32, i32, i32
  }
}

module attributes {stable_mosaic.version = 11 : i64} {
  func.func @_unit_gcn_kernel(%arg0: i32, %arg1: i32, %arg2: memref<1x8x128xf32, #tpu.memory_space<vmem>>, %arg3: memref<3x128x128xf32, #tpu.memory_space<vmem>>, %arg4: memref<4x32xf32, #tpu.memory_space<vmem>>, %arg5: memref<4x1xf32, #tpu.memory_space<vmem>>, %arg6: memref<1x4x128xf32, #tpu.memory_space<vmem>>, %arg7: memref<32x128xf32, #tpu.memory_space<vmem>>) attributes {dimension_semantics = [#tpu.dimension_semantics<parallel>, #tpu.dimension_semantics<parallel>], iteration_bounds = array<i64: 2, 2>, scalar_prefetch = 0 : i64, scratch_operands = 1 : i64, tpu.core_type = #tpu.core_type<tc>, window_params = [{transform_indices = @transform_0, window_bounds = array<i64: 1, 8, 128>}, {pipeline_mode = #tpu.pipeline_mode<synchronous>, transform_indices = @transform_1, window_bounds = array<i64: 3, 128, 128>}, {pipeline_mode = #tpu.pipeline_mode<synchronous>, transform_indices = @transform_2, window_bounds = array<i64: 4, 32>}, {pipeline_mode = #tpu.pipeline_mode<synchronous>, transform_indices = @transform_3, window_bounds = array<i64: 4, 1>}, {transform_indices = @transform_4, window_bounds = array<i64: 1, 4, 128>}]} {
    %c0 = arith.constant 0 : index
    %c0_0 = arith.constant 0 : index
    %c0_1 = arith.constant 0 : index
    %0 = vector.load %arg2[%c0, %c0_0, %c0_1] : memref<1x8x128xf32, #tpu.memory_space<vmem>>, vector<1x8x128xf32>
    %1 = vector.shape_cast %0 : vector<1x8x128xf32> to vector<8x128xf32>
    %c0_2 = arith.constant 0 : index
    %c0_3 = arith.constant 0 : index
    %c0_4 = arith.constant 0 : index
    %2 = vector.load %arg3[%c0_2, %c0_3, %c0_4] : memref<3x128x128xf32, #tpu.memory_space<vmem>>, vector<1x128x128xf32>
    %3 = vector.shape_cast %2 : vector<1x128x128xf32> to vector<128x128xf32>
    %cst = arith.constant dense<0.000000e+00> : vector<8x128xf32>
    %4 = tpu.matmul %1, %3, %cst {dimension_numbers = #tpu.dot_dimension_numbers<[1], [0], [0], [1], [0, 0, 1, 1], [], []>} : vector<8x128xf32>, vector<128x128xf32>, vector<8x128xf32> -> vector<8x128xf32>
    %c0_5 = arith.constant 0 : index
    %c0_6 = arith.constant 0 : index
    %5 = vector.load %arg7[%c0_5, %c0_6] : memref<32x128xf32, #tpu.memory_space<vmem>>, vector<8x128xf32>
    tpu.vector_store %arg7[%c0_5, %c0_6], %4 {strides = array<i32>} : memref<32x128xf32, #tpu.memory_space<vmem>>, vector<8x128xf32>,
    %c1 = arith.constant 1 : index
    %c0_7 = arith.constant 0 : index
    %c0_8 = arith.constant 0 : index
    %6 = vector.load %arg3[%c1, %c0_7, %c0_8] : memref<3x128x128xf32, #tpu.memory_space<vmem>>, vector<1x128x128xf32>
    %7 = vector.shape_cast %6 : vector<1x128x128xf32> to vector<128x128xf32>
    %cst_9 = arith.constant dense<0.000000e+00> : vector<8x128xf32>
    %8 = tpu.matmul %1, %7, %cst_9 {dimension_numbers = #tpu.dot_dimension_numbers<[1], [0], [0], [1], [0, 0, 1, 1], [], []>} : vector<8x128xf32>, vector<128x128xf32>, vector<8x128xf32> -> vector<8x128xf32>
    %c8 = arith.constant 8 : index
    %c0_10 = arith.constant 0 : index
    %9 = vector.load %arg7[%c8, %c0_10] : memref<32x128xf32, #tpu.memory_space<vmem>>, vector<8x128xf32>
    tpu.vector_store %arg7[%c8, %c0_10], %8 {strides = array<i32>} : memref<32x128xf32, #tpu.memory_space<vmem>>, vector<8x128xf32>,
    %c2 = arith.constant 2 : index
    %c0_11 = arith.constant 0 : index
    %c0_12 = arith.constant 0 : index
    %10 = vector.load %arg3[%c2, %c0_11, %c0_12] : memref<3x128x128xf32, #tpu.memory_space<vmem>>, vector<1x128x128xf32>
    %11 = vector.shape_cast %10 : vector<1x128x128xf32> to vector<128x128xf32>
    %cst_13 = arith.constant dense<0.000000e+00> : vector<8x128xf32>
    %12 = tpu.matmul %1, %11, %cst_13 {dimension_numbers = #tpu.dot_dimension_numbers<[1], [0], [0], [1], [0, 0, 1, 1], [], []>} : vector<8x128xf32>, vector<128x128xf32>, vector<8x128xf32> -> vector<8x128xf32>
    %c16 = arith.constant 16 : index
    %c0_14 = arith.constant 0 : index
    %13 = vector.load %arg7[%c16, %c0_14] : memref<32x128xf32, #tpu.memory_space<vmem>>, vector<8x128xf32>
    tpu.vector_store %arg7[%c16, %c0_14], %12 {strides = array<i32>} : memref<32x128xf32, #tpu.memory_space<vmem>>, vector<8x128xf32>,
    %c24 = arith.constant 24 : index
    %c0_15 = arith.constant 0 : index
    %14 = vector.load %arg7[%c24, %c0_15] : memref<32x128xf32, #tpu.memory_space<vmem>>, vector<8x128xf32>
    tpu.vector_store %arg7[%c24, %c0_15], %1 {strides = array<i32>} : memref<32x128xf32, #tpu.memory_space<vmem>>, vector<8x128xf32>,
    %c0_16 = arith.constant 0 : index
    %c0_17 = arith.constant 0 : index
    %15 = vector.load %arg4[%c0_16, %c0_17] : memref<4x32xf32, #tpu.memory_space<vmem>>, vector<4x32xf32>
    %c0_18 = arith.constant 0 : index
    %c0_19 = arith.constant 0 : index
    %16 = vector.load %arg7[%c0_18, %c0_19] : memref<32x128xf32, #tpu.memory_space<vmem>>, vector<32x128xf32>
    %cst_20 = arith.constant dense<0.000000e+00> : vector<4x128xf32>
    %17 = tpu.matmul %15, %16, %cst_20 {dimension_numbers = #tpu.dot_dimension_numbers<[1], [0], [0], [1], [0, 0, 1, 1], [], []>} : vector<4x32xf32>, vector<32x128xf32>, vector<4x128xf32> -> vector<4x128xf32>
    %c0_21 = arith.constant 0 : index
    %c0_22 = arith.constant 0 : index
    %18 = vector.load %arg5[%c0_21, %c0_22] : memref<4x1xf32, #tpu.memory_space<vmem>>, vector<4x1xf32>
    %19 = vector.broadcast %18 : vector<4x1xf32> to vector<4x128xf32>
    %20 = arith.addf %17, %19 : vector<4x128xf32>
    %cst_23 = arith.constant 0.000000e+00 : f32
    %21 = vector.broadcast %cst_23 : f32 to vector<4x128xf32>
    %22 = arith.maximumf %20, %21 : vector<4x128xf32>
    %c0_24 = arith.constant 0 : index
    %c0_25 = arith.constant 0 : index
    %c0_26 = arith.constant 0 : index
    %23 = vector.load %arg6[%c0_24, %c0_25, %c0_26] : memref<1x4x128xf32, #tpu.memory_space<vmem>>, vector<1x4x128xf32>
    %24 = vector.shape_cast %23 : vector<1x4x128xf32> to vector<4x128xf32>
    %25 = vector.shape_cast %22 : vector<4x128xf32> to vector<1x4x128xf32>
    tpu.vector_store %arg6[%c0_24, %c0_25, %c0_26], %25 {strides = array<i32>} : memref<1x4x128xf32, #tpu.memory_space<vmem>>, vector<1x4x128xf32>,
    return
  }
  func.func @transform_0(%arg0: i32, %arg1: i32) -> (i32, i32, i32) {
    %c0_i32 = arith.constant 0 : i32
    %c0_i32_0 = arith.constant 0 : i32
    return %arg0, %c0_i32, %arg1 : i32, i32, i32
  }
  func.func @transform_1(%arg0: i32, %arg1: i32) -> (i32, i32, i32) {
    %c0_i32 = arith.constant 0 : i32
    %c0_i32_0 = arith.constant 0 : i32
    %c0_i32_1 = arith.constant 0 : i32
    %c0_i32_2 = arith.constant 0 : i32
    return %c0_i32, %c0_i32_0, %c0_i32_1 : i32, i32, i32
  }
  func.func @transform_2(%arg0: i32, %arg1: i32) -> (i32, i32) {
    %c0_i32 = arith.constant 0 : i32
    %c0_i32_0 = arith.constant 0 : i32
    %c0_i32_1 = arith.constant 0 : i32
    return %c0_i32, %c0_i32_0 : i32, i32
  }
  func.func @transform_3(%arg0: i32, %arg1: i32) -> (i32, i32) {
    %c0_i32 = arith.constant 0 : i32
    %c0_i32_0 = arith.constant 0 : i32
    %c0_i32_1 = arith.constant 0 : i32
    return %c0_i32, %c0_i32_0 : i32, i32
  }
  func.func @transform_4(%arg0: i32, %arg1: i32) -> (i32, i32, i32) {
    %c0_i32 = arith.constant 0 : i32
    %c0_i32_0 = arith.constant 0 : i32
    return %arg0, %c0_i32, %arg1 : i32, i32, i32
  }
}

</mosaic_0001>

<llo_original>
// kernel: tpu_custom_call.1
$region0: #{tpu_custom_call.1}
  #allocation0 [shape = 'u32[]', space=smem, size = 0x4, offset = 0x4, fixed_abs, tag = 'smem constant byte address 0x4 - core index']
  #allocation1 [shape = 'u32[72,128]{1,0:T(1,128)}', space=vmem, size = 0x9000, scoped, tag = 'internal scratch']
  #allocation2 [shape = 'f32[32,128]{1,0:T(8,128)}', space=vmem, size = 0x4000, scoped, tag = 'scratch operand']
  %s0 = inlined_call_operand.hbm [shape: f32[2,8,256], index: 0, kind: input, shape index: {}]
  %s1 = inlined_call_operand.hbm [shape: f32[3,128,128], index: 1, kind: input, shape index: {}]
  %s2 = inlined_call_operand.vmem [shape: f32[4,32], index: 2, kind: input, shape index: {}]
  %s3 = inlined_call_operand.vmem [shape: f32[4,1], index: 3, kind: input, shape index: {}]
  %s4 = inlined_call_operand.hbm [shape: f32[2,4,256], index: 4, kind: output, shape index: {}]
  %s5 = sld [smem:[#allocation0]]
  $region57: #{tpu_custom_call.1} parent=0
    _
  %s7 = ssub.s32 1, %s5
  %s8 = scalar_select 0, %s7, %s5
  $region1: #{tpu_custom_call.1} parent=0
    #allocation3 [shape = 'u8[8192]{0}', space=vmem, size = 0x2000, scoped, tag = 'input window, operand 0']
    #allocation4 [shape = 's32[2]{0}', space=sflag, size = 0x8, scoped, tag = 'scoped memory for tpu_custom_call.1']
    #allocation5 [shape = 's32[2]{0}', space=sflag, size = 0x8, scoped, tag = 'scoped memory for tpu_custom_call.1']
    #allocation6 [shape = 'u8[196608]{0}', space=vmem, size = 0x30000, scoped, tag = 'input window, operand 1, single buffered']
    #allocation7 [shape = 's32[1]{0}', space=sflag, size = 0x4, scoped, tag = 'scoped memory for tpu_custom_call.1']
    #allocation8 [shape = 'u8[4096]{0}', space=vmem, size = 0x1000, scoped, tag = 'output window, operand 0']
    %9 = vsyncpa [#allocation4], 0
    %s10 = scalar_lea.sflag [#allocation4], 1
    %11 = vsyncpa %s10, 0
    %12 = vsyncpa [#allocation7], 0
    %13 = vsyncpa [#allocation5], 0
    %s14 = scalar_lea.sflag [#allocation5], 1
    %15 = vsyncpa %s14, 0
    loop: start=0, step=1, limit=6
    $region2: #{tpu_custom_call.1} parent=1 // loop_pre_header
      _
    $region3: #{tpu_custom_call.1} parent=1 // loop_header
      %s17 = sphi 0, %s21
      %p18 = scmp.ge.s32.totalorder %s17, 6
      %s24 = sphi 0, %s36
      %s25 = sphi 0, %s32
      %s26 = sphi 0, %s24
      %s27 = sphi 0, %s25
      %s28 = sphi 0, %s26
      %s29 = sphi 0, %s27
      %s41 = sphi 0, %s43
      %s44 = sphi 0, %s41
      %s45 = sphi 0, %s44
      %s61 = sphi 0, %s45
      %s65 = sphi 0, %s65
      %s67 = sphi 0, %s65
      %s68 = sphi 0, %s67
      %s82 = sphi 0, %s68
      %s86 = sphi 0, %s86
      %s88 = sphi 0, %s86
      %s89 = sphi 0, %s88
      %s103 = sphi 0, %s89
      %s107 = sphi 0, %s107
      %s109 = sphi 0, %s107
      %s110 = sphi 0, %s109
      %s124 = sphi 0, %s110
      %s132 = sphi 0, %s134
      %s135 = sphi 0, %s132
      %s136 = sphi 0, %s135
      %s152 = sphi 0, %s136
    $region4: #{tpu_custom_call.1} parent=1 // loop_header_branch
      %20 = sbr.rel (%p18) target = $region8
    $region5: #{tpu_custom_call.1} parent=1 // loop_body
      %s22 = ssub.s32 %s17, 1
      %s23 = ssub.s32 %s17, 2
      %s30 = sadd.s32 1, %s25
      %p31 = scmp.ge.s32.totalorder %s30, 2
      %s32 = scalar_select %p31, 0, %s30
      %s33 = sadd.s32 1, %s24
      %s34 = scalar_select %p31, %s33, %s24
      %p35 = scmp.ge.s32.totalorder %s34, 2
      %s36 = scalar_select %p35, 0, %s34
      %s37 = ssub.s32 %s24, %s36
      %s38 = ssub.s32 %s25, %s32
      %s39 = sor.u32 %s37, %s38
      %p40 = scmp.eq.s32.totalorder %s39, 0
      %s42 = sadd.s32 %s41, 1
      %s43 = scalar_select %p40, %s41, %s42
      %p46 = pneg %p40
      %p47 = scmp.eq.s32.totalorder %s17, 3
      %p48 = por %p46, %p47
      %p49 = scmp.ne.s32.totalorder %s41, %s44
      %p50 = scmp.eq.s32.totalorder %s17, 0
      %p51 = por %p49, %p50
      %p52 = scmp.ne.s32.totalorder %s41, %s44
      %p53 = scmp.eq.s32.totalorder %s22, 3
      %p54 = por %p52, %p53
      %p55 = scmp.ne.s32.totalorder %s44, %s45
      %p56 = scmp.eq.s32.totalorder %s22, 0
      %p57 = por %p55, %p56
      %p58 = scmp.ne.s32.totalorder %s44, %s45
      %p59 = scmp.eq.s32.totalorder %s23, 3
      %p60 = por %p58, %p59
      %p62 = scmp.ne.s32.totalorder %s45, %s61
      %p63 = scmp.eq.s32.totalorder %s23, 0
      %p64 = por %p62, %p63
      %s66 = sadd.s32 %s65, 1
      %p69 = scmp.eq.s32.totalorder %s17, 3
      %p70 = scmp.ne.s32.totalorder %s65, %s67
      %p71 = scmp.eq.s32.totalorder %s17, 0
      %p72 = por %p70, %p71
      %p73 = scmp.ne.s32.totalorder %s65, %s67
      %p74 = scmp.eq.s32.totalorder %s22, 3
      %p75 = por %p73, %p74
      %p76 = scmp.ne.s32.totalorder %s67, %s68
      %p77 = scmp.eq.s32.totalorder %s22, 0
      %p78 = por %p76, %p77
      %p79 = scmp.ne.s32.totalorder %s67, %s68
      %p80 = scmp.eq.s32.totalorder %s23, 3
      %p81 = por %p79, %p80
      %p83 = scmp.ne.s32.totalorder %s68, %s82
      %p84 = scmp.eq.s32.totalorder %s23, 0
      %p85 = por %p83, %p84
      %s87 = sadd.s32 %s86, 1
      %p90 = scmp.eq.s32.totalorder %s17, 3
      %p91 = scmp.ne.s32.totalorder %s86, %s88
      %p92 = scmp.eq.s32.totalorder %s17, 0
      %p93 = por %p91, %p92
      %p94 = scmp.ne.s32.totalorder %s86, %s88
      %p95 = scmp.eq.s32.totalorder %s22, 3
      %p96 = por %p94, %p95
      %p97 = scmp.ne.s32.totalorder %s88, %s89
      %p98 = scmp.eq.s32.totalorder %s22, 0
      %p99 = por %p97, %p98
      %p100 = scmp.ne.s32.totalorder %s88, %s89
      %p101 = scmp.eq.s32.totalorder %s23, 3
      %p102 = por %p100, %p101
      %p104 = scmp.ne.s32.totalorder %s89, %s103
      %p105 = scmp.eq.s32.totalorder %s23, 0
      %p106 = por %p104, %p105
      %s108 = sadd.s32 %s107, 1
      %p111 = scmp.eq.s32.totalorder %s17, 3
      %p112 = scmp.ne.s32.totalorder %s107, %s109
      %p113 = scmp.eq.s32.totalorder %s17, 0
      %p114 = por %p112, %p113
      %p115 = scmp.ne.s32.totalorder %s107, %s109
      %p116 = scmp.eq.s32.totalorder %s22, 3
      %p117 = por %p115, %p116
      %p118 = scmp.ne.s32.totalorder %s109, %s110
      %p119 = scmp.eq.s32.totalorder %s22, 0
      %p120 = por %p118, %p119
      %p121 = scmp.ne.s32.totalorder %s109, %s110
      %p122 = scmp.eq.s32.totalorder %s23, 3
      %p123 = por %p121, %p122
      %p125 = scmp.ne.s32.totalorder %s110, %s124
      %p126 = scmp.eq.s32.totalorder %s23, 0
      %p127 = por %p125, %p126
      %s128 = ssub.s32 %s24, %s36
      %s129 = ssub.s32 %s25, %s32
      %s130 = sor.u32 %s128, %s129
      %p131 = scmp.eq.s32.totalorder %s130, 0
      %s133 = sadd.s32 %s132, 1
      %s134 = scalar_select %p131, %s132, %s133
      %p137 = pneg %p131
      %p138 = scmp.eq.s32.totalorder %s17, 3
      %p139 = por %p137, %p138
      %p140 = scmp.ne.s32.totalorder %s132, %s135
      %p141 = scmp.eq.s32.totalorder %s17, 0
      %p142 = por %p140, %p141
      %p143 = scmp.ne.s32.totalorder %s132, %s135
      %p144 = scmp.eq.s32.totalorder %s22, 3
      %p145 = por %p143, %p144
      %p146 = scmp.ne.s32.totalorder %s135, %s136
      %p147 = scmp.eq.s32.totalorder %s22, 0
      %p148 = por %p146, %p147
      %p149 = scmp.ne.s32.totalorder %s135, %s136
      %p150 = scmp.eq.s32.totalorder %s23, 3
      %p151 = por %p149, %p150
      %p153 = scmp.ne.s32.totalorder %s136, %s152
      %p154 = scmp.eq.s32.totalorder %s23, 0
      %p155 = por %p153, %p154
      %p156 = scmp.le.s32.totalorder 1, %s17
      %p157 = scmp.lt.s32.totalorder %s17, 5
      %p158 = pnand %p156, %p157
      %p159 = pneg %p158
      // Predicated region
      $region9: #{tpu_custom_call.1} parent=5 // pred_check
        _
      $region10: #{tpu_custom_call.1} parent=5 // pred_check_branch
        %161 = sbr.rel (%p158) target = $region12
      $region11: #{tpu_custom_call.1} parent=5 // pred_region
        %s162 = ssub.s32 %s17, 1
        // Predicated region
        $region13: #{tpu_custom_call.1} parent=11 // pred_check
          %p163 = pneg %p78
        $region14: #{tpu_custom_call.1} parent=11 // pred_check_branch
          %165 = sbr.rel (%p163) target = $region16
        $region15: #{tpu_custom_call.1} parent=11 // pred_region
          %167 = vsyncadd [#allocation7], 0
          %s168 = sshll.u32 %s1, 4
          %s169 = int_to_ptr.hbm [resolvable:$true] %s168
          %s170 = sshll.u32 [#allocation6], 4
          %s171 = int_to_ptr.vmem [resolvable:$true] %s170
          %176 = dma.hbm_to_vmem [thread:$0]  %s169, 6144, %s171, [#allocation7], 128, 128, 8
        $region16: #{tpu_custom_call.1} parent=11 // pred_fallthru
          _
        // Predicated region
        $region17: #{tpu_custom_call.1} parent=11 // pred_check
          %p177 = pneg %p99
        $region18: #{tpu_custom_call.1} parent=11 // pred_check_branch
          %179 = sbr.rel (%p177) target = $region20
        $region19: #{tpu_custom_call.1} parent=11 // pred_region
          _
        $region20: #{tpu_custom_call.1} parent=11 // pred_fallthru
          _
        // Predicated region
        $region21: #{tpu_custom_call.1} parent=11 // pred_check
          %p180 = pneg %p120
        $region22: #{tpu_custom_call.1} parent=11 // pred_check_branch
          %182 = sbr.rel (%p180) target = $region24
        $region23: #{tpu_custom_call.1} parent=11 // pred_region
          _
        $region24: #{tpu_custom_call.1} parent=11 // pred_fallthru
          _
      $region12: #{tpu_custom_call.1} parent=5 // pred_fallthru
        _
      %p183 = scmp.lt.s32.totalorder %s17, 4
      // Predicated region
      $region25: #{tpu_custom_call.1} parent=5 // pred_check
        %p184 = pneg %p183
      $region26: #{tpu_custom_call.1} parent=5 // pred_check_branch
        %186 = sbr.rel (%p184) target = $region28
      $region27: #{tpu_custom_call.1} parent=5 // pred_region
        // Predicated region
        $region29: #{tpu_custom_call.1} parent=27 // pred_check
          %p187 = pneg %p51
        $region30: #{tpu_custom_call.1} parent=27 // pred_check_branch
          %189 = sbr.rel (%p187) target = $region32
        $region31: #{tpu_custom_call.1} parent=27 // pred_region
          %s190 = sand.u32 %s41, 1
          %s191 = scalar_lea.sflag [#allocation4], %s190
          %s192 = sand.u32 %s41, 1
          %s193 = smul.addr %s192, 8
          %s194 = scalar_lea.vmem [#allocation3], %s193
          %196 = vsyncadd %s191, 0
          %s197 = smul.addr %s24, 2
          %s198 = sadd.s32 %s25, %s197
          %s199 = smul.addr %s198, 8
          %s200 = scalar_lea.hbm %s0, %s199
          %s202 = sshll.u32 %s200, 4
          %s203 = int_to_ptr.hbm [resolvable:$true] %s202
          %s204 = sshll.u32 %s194, 4
          %s205 = int_to_ptr.vmem [resolvable:$true] %s204
          %207 = dma.hbm_to_vmem [thread:$0]  %s203, 128, %s205, %s191
        $region32: #{tpu_custom_call.1} parent=27 // pred_fallthru
          _
      $region28: #{tpu_custom_call.1} parent=5 // pred_fallthru
        _
      %p208 = scmp.le.s32.totalorder 1, %s17
      %p209 = scmp.lt.s32.totalorder %s17, 5
      %p210 = pnand %p208, %p209
      %p211 = pneg %p210
      // Predicated region
      $region33: #{tpu_custom_call.1} parent=5 // pred_check
        _
      $region34: #{tpu_custom_call.1} parent=5 // pred_check_branch
        %213 = sbr.rel (%p210) target = $region36
      $region35: #{tpu_custom_call.1} parent=5 // pred_region
        %s214 = ssub.s32 %s17, 1
        %s215 = sand.u32 %s44, 1
        %s216 = scalar_lea.sflag [#allocation4], %s215
        %s217 = sand.u32 %s44, 1
        %s218 = smul.addr %s217, 8
        %s219 = scalar_lea.vmem [#allocation3], %s218
        // Predicated region
        $region37: #{tpu_custom_call.1} parent=35 // pred_check
          %p220 = pneg %p57
        $region38: #{tpu_custom_call.1} parent=35 // pred_check_branch
          %222 = sbr.rel (%p220) target = $region40
        $region39: #{tpu_custom_call.1} parent=35 // pred_region
          %224 = dma.done %s216, 128
        $region40: #{tpu_custom_call.1} parent=35 // pred_fallthru
          _
        // Predicated region
        $region41: #{tpu_custom_call.1} parent=35 // pred_check
          %p225 = pneg %p78
        $region42: #{tpu_custom_call.1} parent=35 // pred_check_branch
          %227 = sbr.rel (%p225) target = $region44
        $region43: #{tpu_custom_call.1} parent=35 // pred_region
          %229 = dma.done [#allocation7], 6144
        $region44: #{tpu_custom_call.1} parent=35 // pred_fallthru
          _
        %s230 = sand.u32 %s44, 1
        %s231 = scalar_lea.sflag [#allocation4], %s230
        %s232 = sand.u32 %s44, 1
        %s233 = smul.addr %s232, 8
        %s234 = scalar_lea.vmem [#allocation3], %s233
        %p235 = pneg %p57
        %p236 = pneg %p54
        %p237 = pneg %p78
        %p238 = pneg %p75
        %p239 = pneg %p99
        %p240 = pneg %p96
        %p241 = pneg %p120
        %p242 = pneg %p117
        %p243 = pneg %p148
        %p244 = pneg %p145
        %s245 = sand.u32 %s135, 1
        %s246 = scalar_lea.sflag [#allocation5], %s245
        %s247 = sand.u32 %s135, 1
        %s248 = smul.addr %s247, 4
        %s249 = scalar_lea.vmem [#allocation8], %s248
        %v250 = vld [vmem:[%s219] sm:$0xff]
        %v251 = vld [vmem:[#allocation6] sm:$0xff]
        %v252 = vld [vmem:[#allocation6 + $0x8] sm:$0xff]
        %v253 = vld [vmem:[#allocation6 + $0x10] sm:$0xff]
        %v254 = vld [vmem:[#allocation6 + $0x18] sm:$0xff]
        %v255 = vld [vmem:[#allocation6 + $0x20] sm:$0xff]
        %v256 = vld [vmem:[#allocation6 + $0x28] sm:$0xff]
        %v257 = vld [vmem:[#allocation6 + $0x30] sm:$0xff]
        %v258 = vld [vmem:[#allocation6 + $0x38] sm:$0xff]
        %v259 = vld [vmem:[#allocation6 + $0x40] sm:$0xff]
        %v260 = vld [vmem:[#allocation6 + $0x48] sm:$0xff]
        %v261 = vld [vmem:[#allocation6 + $0x50] sm:$0xff]
        %v262 = vld [vmem:[#allocation6 + $0x58] sm:$0xff]
        %v263 = vld [vmem:[#allocation6 + $0x60] sm:$0xff]
        %v264 = vld [vmem:[#allocation6 + $0x68] sm:$0xff]
        %v265 = vld [vmem:[#allocation6 + $0x70] sm:$0xff]
        %v266 = vld [vmem:[#allocation6 + $0x78] sm:$0xff]
        %267 = vmatpush.msra.mxu0 %v266
        %268 = vmatpush.msra.mxu0 %v265
        %269 = vmatpush.msra.mxu0 %v264
        %270 = vmatpush.msra.mxu0 %v263
        %271 = vmatpush.msra.mxu0 %v262
        %272 = vmatpush.msra.mxu0 %v261
        %273 = vmatpush.msra.mxu0 %v260
        %274 = vmatpush.msra.mxu0 %v259
        %275 = vmatpush.msra.mxu0 %v258
        %276 = vmatpush.msra.mxu0 %v257
        %277 = vmatpush.msra.mxu0 %v256
        %278 = vmatpush.msra.mxu0 %v255
        %279 = vmatpush.msra.mxu0 %v254
        %280 = vmatpush.msra.mxu0 %v253
        %281 = vmatpush.msra.mxu0 %v252
        %282 = vmatpush.msra.mxu0 %v251
        %283 = vmatmul.f32.gmra.mxu0 %v250
        %v284 = vpop.f32.mrf.mxu0
        %v285 = vadd.f32 0.0, %v284
        %286 = vdwg.mxu0
        %287 = vst [vmem:[#allocation2] sm:$0xff] %v285
        %s288 = scalar_lea.vmem [#allocation6], 128
        %v289 = vld [vmem:[%s288] sm:$0xff]
        %v290 = vld [vmem:[%s288 + $0x8] sm:$0xff]
        %v291 = vld [vmem:[%s288 + $0x10] sm:$0xff]
        %v292 = vld [vmem:[%s288 + $0x18] sm:$0xff]
        %v293 = vld [vmem:[%s288 + $0x20] sm:$0xff]
        %v294 = vld [vmem:[%s288 + $0x28] sm:$0xff]
        %v295 = vld [vmem:[%s288 + $0x30] sm:$0xff]
        %v296 = vld [vmem:[%s288 + $0x38] sm:$0xff]
        %v297 = vld [vmem:[%s288 + $0x40] sm:$0xff]
        %v298 = vld [vmem:[%s288 + $0x48] sm:$0xff]
        %v299 = vld [vmem:[%s288 + $0x50] sm:$0xff]
        %v300 = vld [vmem:[%s288 + $0x58] sm:$0xff]
        %v301 = vld [vmem:[%s288 + $0x60] sm:$0xff]
        %v302 = vld [vmem:[%s288 + $0x68] sm:$0xff]
        %v303 = vld [vmem:[%s288 + $0x70] sm:$0xff]
        %v304 = vld [vmem:[%s288 + $0x78] sm:$0xff]
        %305 = vmatpush.msra.mxu0 %v304
        %306 = vmatpush.msra.mxu0 %v303
        %307 = vmatpush.msra.mxu0 %v302
        %308 = vmatpush.msra.mxu0 %v301
        %309 = vmatpush.msra.mxu0 %v300
        %310 = vmatpush.msra.mxu0 %v299
        %311 = vmatpush.msra.mxu0 %v298
        %312 = vmatpush.msra.mxu0 %v297
        %313 = vmatpush.msra.mxu0 %v296
        %314 = vmatpush.msra.mxu0 %v295
        %315 = vmatpush.msra.mxu0 %v294
        %316 = vmatpush.msra.mxu0 %v293
        %317 = vmatpush.msra.mxu0 %v292
        %318 = vmatpush.msra.mxu0 %v291
        %319 = vmatpush.msra.mxu0 %v290
        %320 = vmatpush.msra.mxu0 %v289
        %321 = vmatmul.f32.gmra.mxu0 %v250
        %v322 = vpop.f32.mrf.mxu0
        %v323 = vadd.f32 0.0, %v322
        %324 = vdwg.mxu0
        %325 = vst [vmem:[#allocation2 + $0x8] sm:$0xff] %v323
        %s326 = scalar_lea.vmem [#allocation6], 256
        %v327 = vld [vmem:[%s326] sm:$0xff]
        %v328 = vld [vmem:[%s326 + $0x8] sm:$0xff]
        %v329 = vld [vmem:[%s326 + $0x10] sm:$0xff]
        %v330 = vld [vmem:[%s326 + $0x18] sm:$0xff]
        %v331 = vld [vmem:[%s326 + $0x20] sm:$0xff]
        %v332 = vld [vmem:[%s326 + $0x28] sm:$0xff]
        %v333 = vld [vmem:[%s326 + $0x30] sm:$0xff]
        %v334 = vld [vmem:[%s326 + $0x38] sm:$0xff]
        %v335 = vld [vmem:[%s326 + $0x40] sm:$0xff]
        %v336 = vld [vmem:[%s326 + $0x48] sm:$0xff]
        %v337 = vld [vmem:[%s326 + $0x50] sm:$0xff]
        %v338 = vld [vmem:[%s326 + $0x58] sm:$0xff]
        %v339 = vld [vmem:[%s326 + $0x60] sm:$0xff]
        %v340 = vld [vmem:[%s326 + $0x68] sm:$0xff]
        %v341 = vld [vmem:[%s326 + $0x70] sm:$0xff]
        %v342 = vld [vmem:[%s326 + $0x78] sm:$0xff]
        %343 = vmatpush.msra.mxu0 %v342
        %344 = vmatpush.msra.mxu0 %v341
        %345 = vmatpush.msra.mxu0 %v340
        %346 = vmatpush.msra.mxu0 %v339
        %347 = vmatpush.msra.mxu0 %v338
        %348 = vmatpush.msra.mxu0 %v337
        %349 = vmatpush.msra.mxu0 %v336
        %350 = vmatpush.msra.mxu0 %v335
        %351 = vmatpush.msra.mxu0 %v334
        %352 = vmatpush.msra.mxu0 %v333
        %353 = vmatpush.msra.mxu0 %v332
        %354 = vmatpush.msra.mxu0 %v331
        %355 = vmatpush.msra.mxu0 %v330
        %356 = vmatpush.msra.mxu0 %v329
        %357 = vmatpush.msra.mxu0 %v328
        %358 = vmatpush.msra.mxu0 %v327
        %359 = vmatmul.f32.gmra.mxu0 %v250
        %v360 = vpop.f32.mrf.mxu0
        %v361 = vadd.f32 0.0, %v360
        %362 = vdwg.mxu0
        %363 = vst [vmem:[#allocation2 + $0x10] sm:$0xff] %v361
        %364 = vst [vmem:[#allocation2 + $0x18] sm:$0xff] %v250
        %v365 = vld [vmem:[%s2] sm:$0xf]
        %v366 = vld [vmem:[#allocation2] sm:$0xff]
        %v367 = vld [vmem:[#allocation2 + $0x8] sm:$0xff]
        %v368 = vld [vmem:[#allocation2 + $0x10] sm:$0xff]
        %v369 = vld [vmem:[#allocation2 + $0x18] sm:$0xff]
        %v370 = vld [vmem:[%s3] sm:$0xf]
        %372 = vset.pattern.permute.xlu0 0
        %373 = vperm.xlu0 %372, %v370
        %v374 = vpop.permute.xlu0 %373
        %vm376 = vcmask 261120
        %v378 = vsel %vm376, %v365, 0
        %380 = vmatpush.msra.mxu0 0.0
        %381 = vmatpush.msra.mxu0 0.0
        %382 = vmatpush.msra.mxu0 0.0
        %383 = vmatpush.msra.mxu0 0.0
        %384 = vmatpush.msra.mxu0 0.0
        %385 = vmatpush.msra.mxu0 0.0
        %386 = vmatpush.msra.mxu0 0.0
        %387 = vmatpush.msra.mxu0 0.0
        %388 = vmatpush.msra.mxu0 0.0
        %389 = vmatpush.msra.mxu0 0.0
        %390 = vmatpush.msra.mxu0 0.0
        %391 = vmatpush.msra.mxu0 0.0
        %392 = vmatpush.msra.mxu0 %v369
        %393 = vmatpush.msra.mxu0 %v368
        %394 = vmatpush.msra.mxu0 %v367
        %395 = vmatpush.msra.mxu0 %v366
        %396 = vmatmul.f32.gmra.mxu0 %v378
        %v397 = vpop.f32.mrf.mxu0
        %v398 = vadd.f32 %v374, %v397
        %399 = vdwg.mxu0
        %v400 = vmax.f32 %v398, 0.0
        %401 = vst [vmem:[%s249] sm:$0xf] %v400
        %s402 = sand.u32 %s135, 1
        %s403 = scalar_lea.sflag [#allocation5], %s402
        %s404 = sand.u32 %s135, 1
        %s405 = smul.addr %s404, 4
        %s406 = scalar_lea.vmem [#allocation8], %s405
        // Predicated region
        $region45: #{tpu_custom_call.1} parent=35 // pred_check
          %p407 = pneg %p145
        $region46: #{tpu_custom_call.1} parent=35 // pred_check_branch
          %409 = sbr.rel (%p407) target = $region48
        $region47: #{tpu_custom_call.1} parent=35 // pred_region
          %411 = vsyncadd %s403, 0
          %s412 = smul.addr %s26, 2
          %s413 = sadd.s32 %s27, %s412
          %s414 = smul.addr %s413, 4
          %s415 = scalar_lea.hbm %s4, %s414
          %s417 = sshll.u32 %s406, 4
          %s418 = int_to_ptr.vmem [resolvable:$true] %s417
          %s419 = sshll.u32 %s415, 4
          %s420 = int_to_ptr.hbm [resolvable:$true] %s419
          %422 = dma.vmem_to_hbm [thread:$0]  %s418, 64, %s420, %s403
        $region48: #{tpu_custom_call.1} parent=35 // pred_fallthru
          _
      $region36: #{tpu_custom_call.1} parent=5 // pred_fallthru
        _
      %p423 = scmp.le.s32.totalorder 2, %s17
      // Predicated region
      $region49: #{tpu_custom_call.1} parent=5 // pred_check
        %p424 = pneg %p423
      $region50: #{tpu_custom_call.1} parent=5 // pred_check_branch
        %426 = sbr.rel (%p424) target = $region52
      $region51: #{tpu_custom_call.1} parent=5 // pred_region
        %s427 = ssub.s32 %s17, 2
        // Predicated region
        $region53: #{tpu_custom_call.1} parent=51 // pred_check
          %p428 = pneg %p151
        $region54: #{tpu_custom_call.1} parent=51 // pred_check_branch
          %430 = sbr.rel (%p428) target = $region56
        $region55: #{tpu_custom_call.1} parent=51 // pred_region
          %s431 = sand.u32 %s136, 1
          %s432 = scalar_lea.sflag [#allocation5], %s431
          %s433 = sand.u32 %s136, 1
          %s434 = smul.addr %s433, 4
          %s435 = scalar_lea.vmem [#allocation8], %s434
          %437 = dma.done %s432, 64
        $region56: #{tpu_custom_call.1} parent=51 // pred_fallthru
          _
      $region52: #{tpu_custom_call.1} parent=5 // pred_fallthru
        _
    $region6: #{tpu_custom_call.1} parent=1 // loop_footer
      %s21 = sadd.s32 1, %s17
    $region7: #{tpu_custom_call.1} parent=1 // loop_footer_branch
      %16 = sbr.rel target = $region3
    $region8: #{tpu_custom_call.1} parent=1 // loop_exit
      _
    %438 = vsyncpa [#allocation4], 1
    %s439 = scalar_lea.sflag [#allocation4], 1
    %440 = vsyncpa %s439, 1
    %441 = vsyncpa [#allocation7], 1
    %442 = vsyncpa [#allocation5], 1
    %s443 = scalar_lea.sflag [#allocation5], 1
    %444 = vsyncpa %s443, 1

// kernel: tpu_custom_call.1
$region0: #{tpu_custom_call.1}
  #allocation0 [shape = 'u32[]', space=smem, size = 0x4, offset = 0x4, fixed_abs, tag = 'smem constant byte address 0x4 - core index']
  #allocation1 [shape = 'u32[72,128]{1,0:T(1,128)}', space=vmem, size = 0x9000, scoped, tag = 'internal scratch']
  #allocation2 [shape = 'f32[32,128]{1,0:T(8,128)}', space=vmem, size = 0x4000, scoped, tag = 'scratch operand']
  %s0 = inlined_call_operand.hbm [shape: f32[2,8,256], index: 0, kind: input, shape index: {}]
  %s1 = inlined_call_operand.hbm [shape: f32[3,128,128], index: 1, kind: input, shape index: {}]
  %s2 = inlined_call_operand.vmem [shape: f32[4,32], index: 2, kind: input, shape index: {}]
  %s3 = inlined_call_operand.vmem [shape: f32[4,1], index: 3, kind: input, shape index: {}]
  %s4 = inlined_call_operand.hbm [shape: f32[2,4,256], index: 4, kind: output, shape index: {}]
  %s5 = sld [smem:[#allocation0]]
  $region57: #{tpu_custom_call.1} parent=0
    _
  %s7 = ssub.s32 1, %s5
  %s8 = scalar_select 0, %s7, %s5
  $region1: #{tpu_custom_call.1} parent=0
    #allocation3 [shape = 'u8[8192]{0}', space=vmem, size = 0x2000, scoped, tag = 'input window, operand 0']
    #allocation4 [shape = 's32[2]{0}', space=sflag, size = 0x8, scoped, tag = 'scoped memory for tpu_custom_call.1']
    #allocation5 [shape = 's32[2]{0}', space=sflag, size = 0x8, scoped, tag = 'scoped memory for tpu_custom_call.1']
    #allocation6 [shape = 'u8[196608]{0}', space=vmem, size = 0x30000, scoped, tag = 'input window, operand 1, single buffered']
    #allocation7 [shape = 's32[1]{0}', space=sflag, size = 0x4, scoped, tag = 'scoped memory for tpu_custom_call.1']
    #allocation8 [shape = 'u8[4096]{0}', space=vmem, size = 0x1000, scoped, tag = 'output window, operand 0']
    %9 = vsyncpa [#allocation4], 0
    %s10 = scalar_lea.sflag [#allocation4], 1
    %11 = vsyncpa %s10, 0
    %12 = vsyncpa [#allocation7], 0
    %13 = vsyncpa [#allocation5], 0
    %s14 = scalar_lea.sflag [#allocation5], 1
    %15 = vsyncpa %s14, 0
    loop: start=0, step=1, limit=6
    $region2: #{tpu_custom_call.1} parent=1 // loop_pre_header
      _
    $region3: #{tpu_custom_call.1} parent=1 // loop_header
      %s17 = sphi 0, %s21
      %p18 = scmp.ge.s32.totalorder %s17, 6
      %s24 = sphi 0, %s36
      %s25 = sphi 0, %s32
      %s26 = sphi 0, %s24
      %s27 = sphi 0, %s25
      %s28 = sphi 0, %s26
      %s29 = sphi 0, %s27
      %s41 = sphi 0, %s43
      %s44 = sphi 0, %s41
      %s45 = sphi 0, %s44
      %s61 = sphi 0, %s45
      %s65 = sphi 0, %s65
      %s67 = sphi 0, %s65
      %s68 = sphi 0, %s67
      %s82 = sphi 0, %s68
      %s86 = sphi 0, %s86
      %s88 = sphi 0, %s86
      %s89 = sphi 0, %s88
      %s103 = sphi 0, %s89
      %s107 = sphi 0, %s107
      %s109 = sphi 0, %s107
      %s110 = sphi 0, %s109
      %s124 = sphi 0, %s110
      %s132 = sphi 0, %s134
      %s135 = sphi 0, %s132
      %s136 = sphi 0, %s135
      %s152 = sphi 0, %s136
    $region4: #{tpu_custom_call.1} parent=1 // loop_header_branch
      %20 = sbr.rel (%p18) target = $region8
    $region5: #{tpu_custom_call.1} parent=1 // loop_body
      %s22 = ssub.s32 %s17, 1
      %s23 = ssub.s32 %s17, 2
      %s30 = sadd.s32 1, %s25
      %p31 = scmp.ge.s32.totalorder %s30, 2
      %s32 = scalar_select %p31, 0, %s30
      %s33 = sadd.s32 1, %s24
      %s34 = scalar_select %p31, %s33, %s24
      %p35 = scmp.ge.s32.totalorder %s34, 2
      %s36 = scalar_select %p35, 0, %s34
      %s37 = ssub.s32 %s24, %s36
      %s38 = ssub.s32 %s25, %s32
      %s39 = sor.u32 %s37, %s38
      %p40 = scmp.eq.s32.totalorder %s39, 0
      %s42 = sadd.s32 %s41, 1
      %s43 = scalar_select %p40, %s41, %s42
      %p46 = pneg %p40
      %p47 = scmp.eq.s32.totalorder %s17, 3
      %p48 = por %p46, %p47
      %p49 = scmp.ne.s32.totalorder %s41, %s44
      %p50 = scmp.eq.s32.totalorder %s17, 0
      %p51 = por %p49, %p50
      %p52 = scmp.ne.s32.totalorder %s41, %s44
      %p53 = scmp.eq.s32.totalorder %s22, 3
      %p54 = por %p52, %p53
      %p55 = scmp.ne.s32.totalorder %s44, %s45
      %p56 = scmp.eq.s32.totalorder %s22, 0
      %p57 = por %p55, %p56
      %p58 = scmp.ne.s32.totalorder %s44, %s45
      %p59 = scmp.eq.s32.totalorder %s23, 3
      %p60 = por %p58, %p59
      %p62 = scmp.ne.s32.totalorder %s45, %s61
      %p63 = scmp.eq.s32.totalorder %s23, 0
      %p64 = por %p62, %p63
      %s66 = sadd.s32 %s65, 1
      %p69 = scmp.eq.s32.totalorder %s17, 3
      %p70 = scmp.ne.s32.totalorder %s65, %s67
      %p71 = scmp.eq.s32.totalorder %s17, 0
      %p72 = por %p70, %p71
      %p73 = scmp.ne.s32.totalorder %s65, %s67
      %p74 = scmp.eq.s32.totalorder %s22, 3
      %p75 = por %p73, %p74
      %p76 = scmp.ne.s32.totalorder %s67, %s68
      %p77 = scmp.eq.s32.totalorder %s22, 0
      %p78 = por %p76, %p77
      %p79 = scmp.ne.s32.totalorder %s67, %s68
      %p80 = scmp.eq.s32.totalorder %s23, 3
      %p81 = por %p79, %p80
      %p83 = scmp.ne.s32.totalorder %s68, %s82
      %p84 = scmp.eq.s32.totalorder %s23, 0
      %p85 = por %p83, %p84
      %s87 = sadd.s32 %s86, 1
      %p90 = scmp.eq.s32.totalorder %s17, 3
      %p91 = scmp.ne.s32.totalorder %s86, %s88
      %p92 = scmp.eq.s32.totalorder %s17, 0
      %p93 = por %p91, %p92
      %p94 = scmp.ne.s32.totalorder %s86, %s88
      %p95 = scmp.eq.s32.totalorder %s22, 3
      %p96 = por %p94, %p95
      %p97 = scmp.ne.s32.totalorder %s88, %s89
      %p98 = scmp.eq.s32.totalorder %s22, 0
      %p99 = por %p97, %p98
      %p100 = scmp.ne.s32.totalorder %s88, %s89
      %p101 = scmp.eq.s32.totalorder %s23, 3
      %p102 = por %p100, %p101
      %p104 = scmp.ne.s32.totalorder %s89, %s103
      %p105 = scmp.eq.s32.totalorder %s23, 0
      %p106 = por %p104, %p105
      %s108 = sadd.s32 %s107, 1
      %p111 = scmp.eq.s32.totalorder %s17, 3
      %p112 = scmp.ne.s32.totalorder %s107, %s109
      %p113 = scmp.eq.s32.totalorder %s17, 0
      %p114 = por %p112, %p113
      %p115 = scmp.ne.s32.totalorder %s107, %s109
      %p116 = scmp.eq.s32.totalorder %s22, 3
      %p117 = por %p115, %p116
      %p118 = scmp.ne.s32.totalorder %s109, %s110
      %p119 = scmp.eq.s32.totalorder %s22, 0
      %p120 = por %p118, %p119
      %p121 = scmp.ne.s32.totalorder %s109, %s110
      %p122 = scmp.eq.s32.totalorder %s23, 3
      %p123 = por %p121, %p122
      %p125 = scmp.ne.s32.totalorder %s110, %s124
      %p126 = scmp.eq.s32.totalorder %s23, 0
      %p127 = por %p125, %p126
      %s128 = ssub.s32 %s24, %s36
      %s129 = ssub.s32 %s25, %s32
      %s130 = sor.u32 %s128, %s129
      %p131 = scmp.eq.s32.totalorder %s130, 0
      %s133 = sadd.s32 %s132, 1
      %s134 = scalar_select %p131, %s132, %s133
      %p137 = pneg %p131
      %p138 = scmp.eq.s32.totalorder %s17, 3
      %p139 = por %p137, %p138
      %p140 = scmp.ne.s32.totalorder %s132, %s135
      %p141 = scmp.eq.s32.totalorder %s17, 0
      %p142 = por %p140, %p141
      %p143 = scmp.ne.s32.totalorder %s132, %s135
      %p144 = scmp.eq.s32.totalorder %s22, 3
      %p145 = por %p143, %p144
      %p146 = scmp.ne.s32.totalorder %s135, %s136
      %p147 = scmp.eq.s32.totalorder %s22, 0
      %p148 = por %p146, %p147
      %p149 = scmp.ne.s32.totalorder %s135, %s136
      %p150 = scmp.eq.s32.totalorder %s23, 3
      %p151 = por %p149, %p150
      %p153 = scmp.ne.s32.totalorder %s136, %s152
      %p154 = scmp.eq.s32.totalorder %s23, 0
      %p155 = por %p153, %p154
      %p156 = scmp.le.s32.totalorder 1, %s17
      %p157 = scmp.lt.s32.totalorder %s17, 5
      %p158 = pnand %p156, %p157
      %p159 = pneg %p158
      // Predicated region
      $region9: #{tpu_custom_call.1} parent=5 // pred_check
        _
      $region10: #{tpu_custom_call.1} parent=5 // pred_check_branch
        %161 = sbr.rel (%p158) target = $region12
      $region11: #{tpu_custom_call.1} parent=5 // pred_region
        %s162 = ssub.s32 %s17, 1
        // Predicated region
        $region13: #{tpu_custom_call.1} parent=11 // pred_check
          %p163 = pneg %p78
        $region14: #{tpu_custom_call.1} parent=11 // pred_check_branch
          %165 = sbr.rel (%p163) target = $region16
        $region15: #{tpu_custom_call.1} parent=11 // pred_region
          %167 = vsyncadd [#allocation7], 0
          %s168 = sshll.u32 %s1, 4
          %s169 = int_to_ptr.hbm [resolvable:$true] %s168
          %s170 = sshll.u32 [#allocation6], 4
          %s171 = int_to_ptr.vmem [resolvable:$true] %s170
          %176 = dma.hbm_to_vmem [thread:$0]  %s169, 6144, %s171, [#allocation7], 128, 128, 8
        $region16: #{tpu_custom_call.1} parent=11 // pred_fallthru
          _
        // Predicated region
        $region17: #{tpu_custom_call.1} parent=11 // pred_check
          %p177 = pneg %p99
        $region18: #{tpu_custom_call.1} parent=11 // pred_check_branch
          %179 = sbr.rel (%p177) target = $region20
        $region19: #{tpu_custom_call.1} parent=11 // pred_region
          _
        $region20: #{tpu_custom_call.1} parent=11 // pred_fallthru
          _
        // Predicated region
        $region21: #{tpu_custom_call.1} parent=11 // pred_check
          %p180 = pneg %p120
        $region22: #{tpu_custom_call.1} parent=11 // pred_check_branch
          %182 = sbr.rel (%p180) target = $region24
        $region23: #{tpu_custom_call.1} parent=11 // pred_region
          _
        $region24: #{tpu_custom_call.1} parent=11 // pred_fallthru
          _
      $region12: #{tpu_custom_call.1} parent=5 // pred_fallthru
        _
      %p183 = scmp.lt.s32.totalorder %s17, 4
      // Predicated region
      $region25: #{tpu_custom_call.1} parent=5 // pred_check
        %p184 = pneg %p183
      $region26: #{tpu_custom_call.1} parent=5 // pred_check_branch
        %186 = sbr.rel (%p184) target = $region28
      $region27: #{tpu_custom_call.1} parent=5 // pred_region
        // Predicated region
        $region29: #{tpu_custom_call.1} parent=27 // pred_check
          %p187 = pneg %p51
        $region30: #{tpu_custom_call.1} parent=27 // pred_check_branch
          %189 = sbr.rel (%p187) target = $region32
        $region31: #{tpu_custom_call.1} parent=27 // pred_region
          %s190 = sand.u32 %s41, 1
          %s191 = scalar_lea.sflag [#allocation4], %s190
          %s192 = sand.u32 %s41, 1
          %s193 = smul.addr %s192, 8
          %s194 = scalar_lea.vmem [#allocation3], %s193
          %196 = vsyncadd %s191, 0
          %s197 = smul.addr %s24, 2
          %s198 = sadd.s32 %s25, %s197
          %s199 = smul.addr %s198, 8
          %s200 = scalar_lea.hbm %s0, %s199
          %s202 = sshll.u32 %s200, 4
          %s203 = int_to_ptr.hbm [resolvable:$true] %s202
          %s204 = sshll.u32 %s194, 4
          %s205 = int_to_ptr.vmem [resolvable:$true] %s204
          %207 = dma.hbm_to_vmem [thread:$0]  %s203, 128, %s205, %s191
        $region32: #{tpu_custom_call.1} parent=27 // pred_fallthru
          _
      $region28: #{tpu_custom_call.1} parent=5 // pred_fallthru
        _
      %p208 = scmp.le.s32.totalorder 1, %s17
      %p209 = scmp.lt.s32.totalorder %s17, 5
      %p210 = pnand %p208, %p209
      %p211 = pneg %p210
      // Predicated region
      $region33: #{tpu_custom_call.1} parent=5 // pred_check
        _
      $region34: #{tpu_custom_call.1} parent=5 // pred_check_branch
        %213 = sbr.rel (%p210) target = $region36
      $region35: #{tpu_custom_call.1} parent=5 // pred_region
        %s214 = ssub.s32 %s17, 1
        %s215 = sand.u32 %s44, 1
        %s216 = scalar_lea.sflag [#allocation4], %s215
        %s217 = sand.u32 %s44, 1
        %s218 = smul.addr %s217, 8
        %s219 = scalar_lea.vmem [#allocation3], %s218
        // Predicated region
        $region37: #{tpu_custom_call.1} parent=35 // pred_check
          %p220 = pneg %p57
        $region38: #{tpu_custom_call.1} parent=35 // pred_check_branch
          %222 = sbr.rel (%p220) target = $region40
        $region39: #{tpu_custom_call.1} parent=35 // pred_region
          %224 = dma.done %s216, 128
        $region40: #{tpu_custom_call.1} parent=35 // pred_fallthru
          _
        // Predicated region
        $region41: #{tpu_custom_call.1} parent=35 // pred_check
          %p225 = pneg %p78
        $region42: #{tpu_custom_call.1} parent=35 // pred_check_branch
          %227 = sbr.rel (%p225) target = $region44
        $region43: #{tpu_custom_call.1} parent=35 // pred_region
          %229 = dma.done [#allocation7], 6144
        $region44: #{tpu_custom_call.1} parent=35 // pred_fallthru
          _
        %s230 = sand.u32 %s44, 1
        %s231 = scalar_lea.sflag [#allocation4], %s230
        %s232 = sand.u32 %s44, 1
        %s233 = smul.addr %s232, 8
        %s234 = scalar_lea.vmem [#allocation3], %s233
        %p235 = pneg %p57
        %p236 = pneg %p54
        %p237 = pneg %p78
        %p238 = pneg %p75
        %p239 = pneg %p99
        %p240 = pneg %p96
        %p241 = pneg %p120
        %p242 = pneg %p117
        %p243 = pneg %p148
        %p244 = pneg %p145
        %s245 = sand.u32 %s135, 1
        %s246 = scalar_lea.sflag [#allocation5], %s245
        %s247 = sand.u32 %s135, 1
        %s248 = smul.addr %s247, 4
        %s249 = scalar_lea.vmem [#allocation8], %s248
        %v250 = vld [vmem:[%s219] sm:$0xff]
        %v251 = vld [vmem:[#allocation6] sm:$0xff]
        %v252 = vld [vmem:[#allocation6 + $0x8] sm:$0xff]
        %v253 = vld [vmem:[#allocation6 + $0x10] sm:$0xff]
        %v254 = vld [vmem:[#allocation6 + $0x18] sm:$0xff]
        %v255 = vld [vmem:[#allocation6 + $0x20] sm:$0xff]
        %v256 = vld [vmem:[#allocation6 + $0x28] sm:$0xff]
        %v257 = vld [vmem:[#allocation6 + $0x30] sm:$0xff]
        %v258 = vld [vmem:[#allocation6 + $0x38] sm:$0xff]
        %v259 = vld [vmem:[#allocation6 + $0x40] sm:$0xff]
        %v260 = vld [vmem:[#allocation6 + $0x48] sm:$0xff]
        %v261 = vld [vmem:[#allocation6 + $0x50] sm:$0xff]
        %v262 = vld [vmem:[#allocation6 + $0x58] sm:$0xff]
        %v263 = vld [vmem:[#allocation6 + $0x60] sm:$0xff]
        %v264 = vld [vmem:[#allocation6 + $0x68] sm:$0xff]
        %v265 = vld [vmem:[#allocation6 + $0x70] sm:$0xff]
        %v266 = vld [vmem:[#allocation6 + $0x78] sm:$0xff]
        %267 = vmatpush.msra.mxu0 %v266
        %268 = vmatpush.msra.mxu0 %v265
        %269 = vmatpush.msra.mxu0 %v264
        %270 = vmatpush.msra.mxu0 %v263
        %271 = vmatpush.msra.mxu0 %v262
        %272 = vmatpush.msra.mxu0 %v261
        %273 = vmatpush.msra.mxu0 %v260
        %274 = vmatpush.msra.mxu0 %v259
        %275 = vmatpush.msra.mxu0 %v258
        %276 = vmatpush.msra.mxu0 %v257
        %277 = vmatpush.msra.mxu0 %v256
        %278 = vmatpush.msra.mxu0 %v255
        %279 = vmatpush.msra.mxu0 %v254
        %280 = vmatpush.msra.mxu0 %v253
        %281 = vmatpush.msra.mxu0 %v252
        %282 = vmatpush.msra.mxu0 %v251
        %283 = vmatmul.f32.gmra.mxu0 %v250
        %v284 = vpop.f32.mrf.mxu0
        %v285 = vadd.f32 0.0, %v284
        %286 = vdwg.mxu0
        %287 = vst [vmem:[#allocation2] sm:$0xff] %v285
        %s288 = scalar_lea.vmem [#allocation6], 128
        %v289 = vld [vmem:[%s288] sm:$0xff]
        %v290 = vld [vmem:[%s288 + $0x8] sm:$0xff]
        %v291 = vld [vmem:[%s288 + $0x10] sm:$0xff]
        %v292 = vld [vmem:[%s288 + $0x18] sm:$0xff]
        %v293 = vld [vmem:[%s288 + $0x20] sm:$0xff]
        %v294 = vld [vmem:[%s288 + $0x28] sm:$0xff]
        %v295 = vld [vmem:[%s288 + $0x30] sm:$0xff]
        %v296 = vld [vmem:[%s288 + $0x38] sm:$0xff]
        %v297 = vld [vmem:[%s288 + $0x40] sm:$0xff]
        %v298 = vld [vmem:[%s288 + $0x48] sm:$0xff]
        %v299 = vld [vmem:[%s288 + $0x50] sm:$0xff]
        %v300 = vld [vmem:[%s288 + $0x58] sm:$0xff]
        %v301 = vld [vmem:[%s288 + $0x60] sm:$0xff]
        %v302 = vld [vmem:[%s288 + $0x68] sm:$0xff]
        %v303 = vld [vmem:[%s288 + $0x70] sm:$0xff]
        %v304 = vld [vmem:[%s288 + $0x78] sm:$0xff]
        %305 = vmatpush.msra.mxu0 %v304
        %306 = vmatpush.msra.mxu0 %v303
        %307 = vmatpush.msra.mxu0 %v302
        %308 = vmatpush.msra.mxu0 %v301
        %309 = vmatpush.msra.mxu0 %v300
        %310 = vmatpush.msra.mxu0 %v299
        %311 = vmatpush.msra.mxu0 %v298
        %312 = vmatpush.msra.mxu0 %v297
        %313 = vmatpush.msra.mxu0 %v296
        %314 = vmatpush.msra.mxu0 %v295
        %315 = vmatpush.msra.mxu0 %v294
        %316 = vmatpush.msra.mxu0 %v293
        %317 = vmatpush.msra.mxu0 %v292
        %318 = vmatpush.msra.mxu0 %v291
        %319 = vmatpush.msra.mxu0 %v290
        %320 = vmatpush.msra.mxu0 %v289
        %321 = vmatmul.f32.gmra.mxu0 %v250
        %v322 = vpop.f32.mrf.mxu0
        %v323 = vadd.f32 0.0, %v322
        %324 = vdwg.mxu0
        %325 = vst [vmem:[#allocation2 + $0x8] sm:$0xff] %v323
        %s326 = scalar_lea.vmem [#allocation6], 256
        %v327 = vld [vmem:[%s326] sm:$0xff]
        %v328 = vld [vmem:[%s326 + $0x8] sm:$0xff]
        %v329 = vld [vmem:[%s326 + $0x10] sm:$0xff]
        %v330 = vld [vmem:[%s326 + $0x18] sm:$0xff]
        %v331 = vld [vmem:[%s326 + $0x20] sm:$0xff]
        %v332 = vld [vmem:[%s326 + $0x28] sm:$0xff]
        %v333 = vld [vmem:[%s326 + $0x30] sm:$0xff]
        %v334 = vld [vmem:[%s326 + $0x38] sm:$0xff]
        %v335 = vld [vmem:[%s326 + $0x40] sm:$0xff]
        %v336 = vld [vmem:[%s326 + $0x48] sm:$0xff]
        %v337 = vld [vmem:[%s326 + $0x50] sm:$0xff]
        %v338 = vld [vmem:[%s326 + $0x58] sm:$0xff]
        %v339 = vld [vmem:[%s326 + $0x60] sm:$0xff]
        %v340 = vld [vmem:[%s326 + $0x68] sm:$0xff]
        %v341 = vld [vmem:[%s326 + $0x70] sm:$0xff]
        %v342 = vld [vmem:[%s326 + $0x78] sm:$0xff]
        %343 = vmatpush.msra.mxu0 %v342
        %344 = vmatpush.msra.mxu0 %v341
        %345 = vmatpush.msra.mxu0 %v340
        %346 = vmatpush.msra.mxu0 %v339
        %347 = vmatpush.msra.mxu0 %v338
        %348 = vmatpush.msra.mxu0 %v337
        %349 = vmatpush.msra.mxu0 %v336
        %350 = vmatpush.msra.mxu0 %v335
        %351 = vmatpush.msra.mxu0 %v334
        %352 = vmatpush.msra.mxu0 %v333
        %353 = vmatpush.msra.mxu0 %v332
        %354 = vmatpush.msra.mxu0 %v331
        %355 = vmatpush.msra.mxu0 %v330
        %356 = vmatpush.msra.mxu0 %v329
        %357 = vmatpush.msra.mxu0 %v328
        %358 = vmatpush.msra.mxu0 %v327
        %359 = vmatmul.f32.gmra.mxu0 %v250
        %v360 = vpop.f32.mrf.mxu0
        %v361 = vadd.f32 0.0, %v360
        %362 = vdwg.mxu0
        %363 = vst [vmem:[#allocation2 + $0x10] sm:$0xff] %v361
        %364 = vst [vmem:[#allocation2 + $0x18] sm:$0xff] %v250
        %v365 = vld [vmem:[%s2] sm:$0xf]
        %v366 = vld [vmem:[#allocation2] sm:$0xff]
        %v367 = vld [vmem:[#allocation2 + $0x8] sm:$0xff]
        %v368 = vld [vmem:[#allocation2 + $0x10] sm:$0xff]
        %v369 = vld [vmem:[#allocation2 + $0x18] sm:$0xff]
        %v370 = vld [vmem:[%s3] sm:$0xf]
        %372 = vset.pattern.permute.xlu0 0
        %373 = vperm.xlu0 %372, %v370
        %v374 = vpop.permute.xlu0 %373
        %vm376 = vcmask 261120
        %v378 = vsel %vm376, %v365, 0
        %380 = vmatpush.msra.mxu0 0.0
        %381 = vmatpush.msra.mxu0 0.0
        %382 = vmatpush.msra.mxu0 0.0
        %383 = vmatpush.msra.mxu0 0.0
        %384 = vmatpush.msra.mxu0 0.0
        %385 = vmatpush.msra.mxu0 0.0
        %386 = vmatpush.msra.mxu0 0.0
        %387 = vmatpush.msra.mxu0 0.0
        %388 = vmatpush.msra.mxu0 0.0
        %389 = vmatpush.msra.mxu0 0.0
        %390 = vmatpush.msra.mxu0 0.0
        %391 = vmatpush.msra.mxu0 0.0
        %392 = vmatpush.msra.mxu0 %v369
        %393 = vmatpush.msra.mxu0 %v368
        %394 = vmatpush.msra.mxu0 %v367
        %395 = vmatpush.msra.mxu0 %v366
        %396 = vmatmul.f32.gmra.mxu0 %v378
        %v397 = vpop.f32.mrf.mxu0
        %v398 = vadd.f32 %v374, %v397
        %399 = vdwg.mxu0
        %v400 = vmax.f32 %v398, 0.0
        %401 = vst [vmem:[%s249] sm:$0xf] %v400
        %s402 = sand.u32 %s135, 1
        %s403 = scalar_lea.sflag [#allocation5], %s402
        %s404 = sand.u32 %s135, 1
        %s405 = smul.addr %s404, 4
        %s406 = scalar_lea.vmem [#allocation8], %s405
        // Predicated region
        $region45: #{tpu_custom_call.1} parent=35 // pred_check
          %p407 = pneg %p145
        $region46: #{tpu_custom_call.1} parent=35 // pred_check_branch
          %409 = sbr.rel (%p407) target = $region48
        $region47: #{tpu_custom_call.1} parent=35 // pred_region
          %411 = vsyncadd %s403, 0
          %s412 = smul.addr %s26, 2
          %s413 = sadd.s32 %s27, %s412
          %s414 = smul.addr %s413, 4
          %s415 = scalar_lea.hbm %s4, %s414
          %s417 = sshll.u32 %s406, 4
          %s418 = int_to_ptr.vmem [resolvable:$true] %s417
          %s419 = sshll.u32 %s415, 4
          %s420 = int_to_ptr.hbm [resolvable:$true] %s419
          %422 = dma.vmem_to_hbm [thread:$0]  %s418, 64, %s420, %s403
        $region48: #{tpu_custom_call.1} parent=35 // pred_fallthru
          _
      $region36: #{tpu_custom_call.1} parent=5 // pred_fallthru
        _
      %p423 = scmp.le.s32.totalorder 2, %s17
      // Predicated region
      $region49: #{tpu_custom_call.1} parent=5 // pred_check
        %p424 = pneg %p423
      $region50: #{tpu_custom_call.1} parent=5 // pred_check_branch
        %426 = sbr.rel (%p424) target = $region52
      $region51: #{tpu_custom_call.1} parent=5 // pred_region
        %s427 = ssub.s32 %s17, 2
        // Predicated region
        $region53: #{tpu_custom_call.1} parent=51 // pred_check
          %p428 = pneg %p151
        $region54: #{tpu_custom_call.1} parent=51 // pred_check_branch
          %430 = sbr.rel (%p428) target = $region56
        $region55: #{tpu_custom_call.1} parent=51 // pred_region
          %s431 = sand.u32 %s136, 1
          %s432 = scalar_lea.sflag [#allocation5], %s431
          %s433 = sand.u32 %s136, 1
          %s434 = smul.addr %s433, 4
          %s435 = scalar_lea.vmem [#allocation8], %s434
          %437 = dma.done %s432, 64
        $region56: #{tpu_custom_call.1} parent=51 // pred_fallthru
          _
      $region52: #{tpu_custom_call.1} parent=5 // pred_fallthru
        _
    $region6: #{tpu_custom_call.1} parent=1 // loop_footer
      %s21 = sadd.s32 1, %s17
    $region7: #{tpu_custom_call.1} parent=1 // loop_footer_branch
      %16 = sbr.rel target = $region3
    $region8: #{tpu_custom_call.1} parent=1 // loop_exit
      _
    %438 = vsyncpa [#allocation4], 1
    %s439 = scalar_lea.sflag [#allocation4], 1
    %440 = vsyncpa %s439, 1
    %441 = vsyncpa [#allocation7], 1
    %442 = vsyncpa [#allocation5], 1
    %s443 = scalar_lea.sflag [#allocation5], 1
    %444 = vsyncpa %s443, 1

</llo_original>
